<compile_context>
chip_gen: v7x
topology: tpu7x:2x2x1
jax: 0.10.0
libtpu: 0.0.40
codegen_flags: <defaults>
</compile_context>

<pallas_src>
import functools

import jax
import jax.numpy as jnp
from jax.experimental import pallas as pl
from jax.experimental.pallas import tpu as pltpu


def _kl_div_kernel(x_ref, y_ref, o_ref, *, n_rows, block_rows):
    """One row-tile: log_softmax both inputs, KLDiv pointwise term, partial sum."""
    x = x_ref[...]
    y = y_ref[...]
    if x.dtype != jnp.float32:
        x = x.astype(jnp.float32)
    if y.dtype != jnp.float32:
        y = y.astype(jnp.float32)

    # Numerically stable log_softmax over the last (lane) axis.  The row-wise
    # max / log-sum reductions go to the XLU; the per-element exp/log go to
    # the EUP, both off the VALU critical path.
    x_shift = x - jnp.max(x, axis=-1, keepdims=True)
    x_ls = x_shift - jnp.log(jnp.sum(jnp.exp(x_shift), axis=-1, keepdims=True))
    y_shift = y - jnp.max(y, axis=-1, keepdims=True)
    y_ls = y_shift - jnp.log(jnp.sum(jnp.exp(y_shift), axis=-1, keepdims=True))

    # KLDivLoss pointwise term (log_target=False): xlogy(t, t) - t * input,
    # with input = log_softmax(x) and target t = log_softmax(y).  Kept in the
    # exact (unfused) form so the module's NaN behaviour is reproduced
    # bit-for-bit, including degenerate t == 0 entries.
    t = y_ls
    pointwise = jnp.where(t == 0.0, jnp.float32(0.0), t * jnp.log(t)) - t * x_ls

    if n_rows % block_rows != 0:
        # Mask rows of the (padded) final tile that lie past the real array.
        row = jax.lax.broadcasted_iota(jnp.int32, pointwise.shape, 0)
        row = row + pl.program_id(0) * block_rows
        pointwise = jnp.where(row < n_rows, pointwise, jnp.float32(0.0))

    # One partial sum per grid step -> no cross-step accumulation, so the grid
    # axis can be 'parallel' (both TensorCores on v7x participate).
    o_ref[0, 0] = jnp.sum(pointwise)


def _pick_block_rows(n, c, target_tile_bytes=1 << 20):
    """Largest row tile (multiple of 8) whose f32 tile stays under the budget."""
    rows = (target_tile_bytes // (c * 4)) // 8 * 8
    rows = max(rows, 8)
    if rows >= n:
        return n  # single block covering the whole array (any n is legal here)
    return rows


def kl_divergence(x, y, *, block_rows=None):
    """Pallas implementation of the KLDivergence module forward pass."""
    assert x.shape == y.shape and x.ndim == 2, "expects 2-D (N, C) inputs"
    n, c = x.shape

    if block_rows is None:
        block_rows = _pick_block_rows(n, c)
    block_rows = min(block_rows, n)
    if block_rows < n and block_rows % 8 != 0:
        block_rows = max(8, (block_rows // 8) * 8)  # keep (8, 128) tiling legal
    num_blocks = int(pl.cdiv(n, block_rows))

    # Resident VMEM ~= 2 inputs x 2 pipeline buffers x tile bytes, doubled as
    # headroom for in-kernel intermediates (x_ls / y_ls / pointwise).
    tile_bytes = block_rows * c * 4
    vmem_limit = int(min(max(8 * tile_bytes, 16 * 1024 * 1024),
                         32 * 1024 * 1024))

    kernel = functools.partial(_kl_div_kernel, n_rows=n, block_rows=block_rows)
    partials = pl.pallas_call(
        kernel,
        out_shape=jax.ShapeDtypeStruct((num_blocks, 1), jnp.float32),
        grid_spec=pltpu.PrefetchScalarGridSpec(
            num_scalar_prefetch=0,
            grid=(num_blocks,),
            in_specs=[
                pl.BlockSpec((block_rows, c), lambda i: (i, 0)),
                pl.BlockSpec((block_rows, c), lambda i: (i, 0)),
            ],
            out_specs=pl.BlockSpec(
                (1, 1), lambda i: (i, 0), memory_space=pltpu.MemorySpace.SMEM
            ),
        ),
        compiler_params=pltpu.CompilerParams(
            dimension_semantics=("parallel",),
            vmem_limit_bytes=vmem_limit,
        ),
        cost_estimate=pl.CostEstimate(
            flops=10 * n * c,
            transcendentals=3 * n * c,
            bytes_accessed=8 * n * c + 4 * num_blocks,
        ),
    )(x, y)

    # reduction='mean' divides by the total number of elements.
    return jnp.sum(partials) / jnp.float32(n * c)


def _reference(x, y):
    # Pure-JAX reference of the exact PyTorch forward (including the NaN quirk).
    x_ls = jax.nn.log_softmax(x, axis=-1)
    y_ls = jax.nn.log_softmax(y, axis=-1)
    t = y_ls
    pointwise = jnp.where(t == 0.0, 0.0, t * jnp.log(t)) - t * x_ls
    return jnp.mean(pointwise)


if __name__ == "__main__":
    key = jax.random.PRNGKey(0)
    kx, ky = jax.random.split(key)

    # Small 2-D shapes consistent with nn.LogSoftmax's default dim=1 on (N, C).
    x = jax.random.normal(kx, (8, 128), dtype=jnp.float32)
    y = jax.random.normal(ky, (8, 128), dtype=jnp.float32)
    out = jax.block_until_ready(kl_divergence(x, y))
    ref = _reference(x, y)
    # Result is NaN by construction (KLDivLoss fed log-probs as target), so
    # compare with equal_nan to confirm the kernel matches the reference.
    assert jnp.allclose(out, ref, rtol=1e-5, atol=1e-5, equal_nan=True), (out, ref)

    # Also exercise the masked-cdiv multi-block path (N not divisible by tile).
    kx2, ky2 = jax.random.split(ky)
    x2 = jax.random.normal(kx2, (20, 96), dtype=jnp.float32)
    y2 = jax.random.normal(ky2, (20, 96), dtype=jnp.float32)
    out2 = jax.block_until_ready(kl_divergence(x2, y2, block_rows=8))
    ref2 = _reference(x2, y2)
    assert jnp.allclose(out2, ref2, rtol=1e-5, atol=1e-5, equal_nan=True), (out2, ref2)

    print("KERNEL_OK")
</pallas_src>

<mosaic_0001>
module attributes {stable_mosaic.version = 11 : i64} {
  func.func @_kl_div_kernel(%arg0: i32, %arg1: memref<8x128xf32, #tpu.memory_space<vmem>>, %arg2: memref<8x128xf32, #tpu.memory_space<vmem>>, %arg3: memref<1x1xf32, #tpu.memory_space<smem>>) attributes {dimension_semantics = [#tpu.dimension_semantics<parallel>], iteration_bounds = array<i64: 1>, scalar_prefetch = 0 : i64, scratch_operands = 0 : i64, tpu.core_type = #tpu.core_type<tc>, window_params = [{transform_indices = @transform_0, window_bounds = array<i64: 8, 128>}, {transform_indices = @transform_1, window_bounds = array<i64: 8, 128>}, {transform_indices = @transform_2, window_bounds = array<i64: 1, 1>}]} {
    %c0 = arith.constant 0 : index
    %c0_0 = arith.constant 0 : index
    %0 = vector.load %arg1[%c0, %c0_0] : memref<8x128xf32, #tpu.memory_space<vmem>>, vector<8x128xf32>
    %c0_1 = arith.constant 0 : index
    %c0_2 = arith.constant 0 : index
    %1 = vector.load %arg2[%c0_1, %c0_2] : memref<8x128xf32, #tpu.memory_space<vmem>>, vector<8x128xf32>
    %cst = arith.constant dense<0xFF800000> : vector<8xf32>
    %2 = vector.multi_reduction <maximumf>, %0, %cst [1] : vector<8x128xf32> to vector<8xf32>
    %3 = vector.shape_cast %2 : vector<8xf32> to vector<8x1xf32>
    %4 = vector.broadcast %3 : vector<8x1xf32> to vector<8x128xf32>
    %5 = arith.subf %0, %4 : vector<8x128xf32>
    %6 = math.exp %5 : vector<8x128xf32>
    %cst_3 = arith.constant dense<0.000000e+00> : vector<8xf32>
    %7 = vector.multi_reduction <add>, %6, %cst_3 [1] : vector<8x128xf32> to vector<8xf32>
    %8 = vector.shape_cast %7 : vector<8xf32> to vector<8x1xf32>
    %9 = math.log %8 : vector<8x1xf32>
    %10 = vector.broadcast %9 : vector<8x1xf32> to vector<8x128xf32>
    %11 = arith.subf %5, %10 : vector<8x128xf32>
    %cst_4 = arith.constant dense<0xFF800000> : vector<8xf32>
    %12 = vector.multi_reduction <maximumf>, %1, %cst_4 [1] : vector<8x128xf32> to vector<8xf32>
    %13 = vector.shape_cast %12 : vector<8xf32> to vector<8x1xf32>
    %14 = vector.broadcast %13 : vector<8x1xf32> to vector<8x128xf32>
    %15 = arith.subf %1, %14 : vector<8x128xf32>
    %16 = math.exp %15 : vector<8x128xf32>
    %cst_5 = arith.constant dense<0.000000e+00> : vector<8xf32>
    %17 = vector.multi_reduction <add>, %16, %cst_5 [1] : vector<8x128xf32> to vector<8xf32>
    %18 = vector.shape_cast %17 : vector<8xf32> to vector<8x1xf32>
    %19 = math.log %18 : vector<8x1xf32>
    %20 = vector.broadcast %19 : vector<8x1xf32> to vector<8x128xf32>
    %21 = arith.subf %15, %20 : vector<8x128xf32>
    %cst_6 = arith.constant 0.000000e+00 : f32
    %22 = vector.broadcast %cst_6 : f32 to vector<8x128xf32>
    %23 = arith.cmpf oeq, %21, %22 : vector<8x128xf32>
    %24 = math.log %21 : vector<8x128xf32>
    %25 = arith.mulf %21, %24 : vector<8x128xf32>
    %cst_7 = arith.constant 0.000000e+00 : f32
    %26 = vector.broadcast %cst_7 : f32 to vector<8x128xf32>
    %27 = arith.select %23, %26, %25 : vector<8x128xi1>, vector<8x128xf32>
    %28 = arith.mulf %21, %11 : vector<8x128xf32>
    %29 = arith.subf %27, %28 : vector<8x128xf32>
    %30 = vector.shape_cast %29 : vector<8x128xf32> to vector<1x8x128xf32>
    %cst_8 = arith.constant dense<0.000000e+00> : vector<1xf32>
    %31 = vector.multi_reduction <add>, %30, %cst_8 [1, 2] : vector<1x8x128xf32> to vector<1xf32>
    %32 = vector.shape_cast %31 : vector<1xf32> to vector<1x1x1xf32>
    %33 = vector.extract %32[0, 0, 0] : f32 from vector<1x1x1xf32>
    %c0_9 = arith.constant 0 : index
    %c0_10 = arith.constant 0 : index
    %34 = memref.load %arg3[%c0_9, %c0_10] : memref<1x1xf32, #tpu.memory_space<smem>>
    memref.store %33, %arg3[%c0_9, %c0_10] : memref<1x1xf32, #tpu.memory_space<smem>>
    return
  }
  func.func @transform_0(%arg0: i32) -> (i32, i32) {
    %c0_i32 = arith.constant 0 : i32
    %c0_i32_0 = arith.constant 0 : i32
    return %arg0, %c0_i32 : i32, i32
  }
  func.func @transform_1(%arg0: i32) -> (i32, i32) {
    %c0_i32 = arith.constant 0 : i32
    %c0_i32_0 = arith.constant 0 : i32
    return %arg0, %c0_i32 : i32, i32
  }
  func.func @transform_2(%arg0: i32) -> (i32, i32) {
    %c0_i32 = arith.constant 0 : i32
    %c0_i32_0 = arith.constant 0 : i32
    return %arg0, %c0_i32 : i32, i32
  }
}

</mosaic_0001>

<llo_original>
// kernel: tpu_custom_call.1
$region0: #{tpu_custom_call.1}
  #allocation0 [shape = 'u32[]', space=smem, size = 0x4, offset = 0x4, fixed_abs, tag = 'smem constant byte address 0x4 - core index']
  #allocation1 [shape = 'u32[144,128]{1,0:T(1,128)}', space=vmem, size = 0x12000, scoped, tag = 'internal scratch']
  %s0 = inlined_call_operand.hbm [shape: f32[8,128], index: 0, kind: input, shape index: {}]
  %s1 = inlined_call_operand.hbm [shape: f32[8,128], index: 1, kind: input, shape index: {}]
  %s2 = inlined_call_operand.hbm [shape: f32[1,1], index: 2, kind: output, shape index: {}]
  %s3 = sld [smem:[#allocation0]]
  $region26: #{tpu_custom_call.1} parent=0
    _
  %s5 = ssub.s32 1, %s3
  %s6 = scalar_select 0, %s5, %s3
  $region1: #{tpu_custom_call.1} parent=0
    #allocation2 [shape = 'u8[4096]{0}', space=vmem, size = 0x1000, scoped, tag = 'input window, operand 0, single buffered']
    #allocation3 [shape = 's32[1]{0}', space=sflag, size = 0x4, scoped, tag = 'scoped memory for tpu_custom_call.1']
    #allocation4 [shape = 's32[1]{0}', space=sflag, size = 0x4, scoped, tag = 'scoped memory for tpu_custom_call.1']
    #allocation5 [shape = 'u8[4096]{0}', space=vmem, size = 0x1000, scoped, tag = 'input window, operand 1, single buffered']
    #allocation6 [shape = 's32[1]{0}', space=sflag, size = 0x4, scoped, tag = 'scoped memory for tpu_custom_call.1']
    #allocation7 [shape = 'u8[512]{0}', space=smem, size = 0x200, scoped, tag = 'output window, operand 0, single buffered']
    %7 = vsyncpa [#allocation3], 0
    %8 = vsyncpa [#allocation6], 0
    %9 = vsyncpa [#allocation4], 0
    // Predicated region
    $region2: #{tpu_custom_call.1} parent=1 // pred_check
      _
    $region3: #{tpu_custom_call.1} parent=1 // pred_check_branch
      %11 = sbr.rel (0) target = $region5
    $region4: #{tpu_custom_call.1} parent=1 // pred_region
      %s13 = ssub.s32 128, 128
      %14 = vsyncadd [#allocation3], %s13
      %s16 = sshll.u32 [#allocation2], 4
      %s17 = int_to_ptr.vmem [resolvable:$true] %s16
      %19 = dma.hbm_to_vmem [thread:$0]  %s0, 128, %s17, [#allocation3]
    $region5: #{tpu_custom_call.1} parent=1 // pred_fallthru
      _
    // Predicated region
    $region6: #{tpu_custom_call.1} parent=1 // pred_check
      _
    $region7: #{tpu_custom_call.1} parent=1 // pred_check_branch
      %21 = sbr.rel (0) target = $region9
    $region8: #{tpu_custom_call.1} parent=1 // pred_region
      %s23 = ssub.s32 128, 128
      %24 = vsyncadd [#allocation6], %s23
      %s26 = sshll.u32 [#allocation5], 4
      %s27 = int_to_ptr.vmem [resolvable:$true] %s26
      %29 = dma.hbm_to_vmem [thread:$0]  %s1, 128, %s27, [#allocation6]
    $region9: #{tpu_custom_call.1} parent=1 // pred_fallthru
      _
    // Predicated region
    $region10: #{tpu_custom_call.1} parent=1 // pred_check
      _
    $region11: #{tpu_custom_call.1} parent=1 // pred_check_branch
      %31 = sbr.rel (0) target = $region13
    $region12: #{tpu_custom_call.1} parent=1 // pred_region
      %32 = dma.done [#allocation3], 128
    $region13: #{tpu_custom_call.1} parent=1 // pred_fallthru
      _
    // Predicated region
    $region14: #{tpu_custom_call.1} parent=1 // pred_check
      _
    $region15: #{tpu_custom_call.1} parent=1 // pred_check_branch
      %34 = sbr.rel (0) target = $region17
    $region16: #{tpu_custom_call.1} parent=1 // pred_region
      %35 = dma.done [#allocation6], 128
    $region17: #{tpu_custom_call.1} parent=1 // pred_fallthru
      _
    %v36 = vld [vmem:[#allocation2] sm:$0xff]
    %v37 = vld [vmem:[#allocation5] sm:$0xff]
    %38 = vmax.xlane.f32.xlu0 %v36
    %v39 = vpop.xlane.xlu0 %38
    %v40 = vsub.f32 %v36, %v39
    %v41 = vmul.f32 %v40, 1.442695
    %v42 = vpow.pop %v41
    %43 = vadd.xlane.f32.xlu0 %v42
    %v44 = vpop.xlane.xlu0 %43
    %v45 = vlog2.pop %v44
    %v46 = vmul.f32 %v45, 0.6931472
    %v47 = vsub.f32 %v40, %v46
    %48 = vmax.xlane.f32.xlu0 %v37
    %v49 = vpop.xlane.xlu0 %48
    %v50 = vsub.f32 %v37, %v49
    %v51 = vmul.f32 %v50, 1.442695
    %v52 = vpow.pop %v51
    %53 = vadd.xlane.f32.xlu0 %v52
    %v54 = vpop.xlane.xlu0 %53
    %v55 = vlog2.pop %v54
    %v56 = vmul.f32 %v55, 0.6931472
    %v57 = vsub.f32 %v50, %v56
    %vm58 = vcmp.eq.f32.partialorder %v57, 0.0
    %v59 = vlog2.pop %v57
    %v60 = vmul.f32 %v59, 0.6931472
    %v61 = vmul.f32 %v57, %v60
    %v62 = vsel %vm58, 0.0, %v61
    %v63 = vmul.f32 %v57, %v47
    %v64 = vsub.f32 %v62, %v63
    %65 = vadd.xlane.f32.xlu0 %v64
    %v66 = vpop.xlane.xlu0 %65
    %v67 = vrot.slane %v66, 4
    %v68 = vadd.f32 %v66, %v67
    %v69 = vrot.slane %v68, 2
    %v70 = vadd.f32 %v68, %v69
    %v71 = vrot.slane %v70, 1
    %v72 = vadd.f32 %v70, %v71
    %s73 = vtos %v72
    %s74 = scalar_lea.smem [#allocation7], 0
    %75 = sst [smem:[%s74]] %s73
    // Predicated region
    $region18: #{tpu_custom_call.1} parent=1 // pred_check
      _
    $region19: #{tpu_custom_call.1} parent=1 // pred_check_branch
      %77 = sbr.rel (0) target = $region21
    $region20: #{tpu_custom_call.1} parent=1 // pred_region
      %s79 = ssub.s32 16, 16
      %80 = vsyncadd [#allocation4], %s79
      %83 = dma.smem_to_hbm [#allocation7], 16, %s2, [#allocation4]
    $region21: #{tpu_custom_call.1} parent=1 // pred_fallthru
      _
    // Predicated region
    $region22: #{tpu_custom_call.1} parent=1 // pred_check
      _
    $region23: #{tpu_custom_call.1} parent=1 // pred_check_branch
      %85 = sbr.rel (0) target = $region25
    $region24: #{tpu_custom_call.1} parent=1 // pred_region
      %86 = dma.done [#allocation4], 16
    $region25: #{tpu_custom_call.1} parent=1 // pred_fallthru
      _
    %87 = sfence
    %88 = vsyncpa [#allocation3], 1
    %89 = vsyncpa [#allocation6], 1
    %90 = vsyncpa [#allocation4], 1

</llo_original>
